<compile_context>
chip_gen: v6e
topology: v6e:2x2x1
jax: 0.10.0
libtpu: 0.0.40
codegen_flags: <defaults>
</compile_context>

<pallas_src>
import jax
import jax.numpy as jnp
from jax.experimental import pallas as pl
from jax.experimental.pallas import tpu as pltpu


def _make_kernel(N, if_positive):
    if if_positive:
        def kernel(x_ref, w1_ref, o_ref):
            recovered = w1_ref[...] ** N                      # (1, p)  VPU
            o_ref[...] = jnp.sum(
                x_ref[...] * recovered, axis=-1, keepdims=True
            ).astype(o_ref.dtype)                             # (TB, 1)
    else:
        def kernel(x_ref, w1_ref, w2_ref, o_ref):
            recovered = w1_ref[...] ** N - w2_ref[...] ** N   # (1, p)  VPU
            o_ref[...] = jnp.sum(
                x_ref[...] * recovered, axis=-1, keepdims=True
            ).astype(o_ref.dtype)                             # (TB, 1)
    return kernel


def _choose_tb(B, p, tb_max=1024):
    """Pick a batch-tile size: ~4 MiB of f32 per x tile, multiple of 8 rows."""
    bytes_per_row = max(1, p * 4)
    target_rows = max(8, (4 * 1024 * 1024) // bytes_per_row)
    tb = min(tb_max, target_rows, max(8, B))
    tb = max(8, (tb // 8) * 8)
    return tb


def implicit_n_forward(x, w1, w2=None, *, N, if_positive=False):
    """x: [B, p] f32, w1 (and w2 if not if_positive): [1, p] f32 -> y: [B, 1]."""
    B, p = x.shape
    assert w1.shape == (1, p)
    if not if_positive:
        assert w2 is not None and w2.shape == (1, p)

    TB = _choose_tb(B, p)
    B_pad = pl.cdiv(B, TB) * TB
    x_p = x if B_pad == B else jnp.pad(x, ((0, B_pad - B), (0, 0)))

    in_specs = [pl.BlockSpec((TB, p), lambda i: (i, 0)),   # x: streamed over B
                pl.BlockSpec((1, p), lambda i: (0, 0))]    # w1: resident
    args = [x_p, w1]
    if not if_positive:
        in_specs.append(pl.BlockSpec((1, p), lambda i: (0, 0)))  # w2: resident
        args.append(w2)

    y_pad = pl.pallas_call(
        _make_kernel(N, if_positive),
        out_shape=jax.ShapeDtypeStruct((B_pad, 1), x.dtype),
        grid_spec=pltpu.PrefetchScalarGridSpec(
            num_scalar_prefetch=0,
            grid=(B_pad // TB,),
            in_specs=in_specs,
            out_specs=pl.BlockSpec((TB, 1), lambda i: (i, 0)),
        ),
        compiler_params=pltpu.CompilerParams(
            dimension_semantics=("parallel",),          # shard B-tiles on v7x
            vmem_limit_bytes=48 * 1024 * 1024,          # headroom on v7x 64MiB
        ),
    )(*args)

    return y_pad[:B] if B_pad != B else y_pad


def reference_forward(x, w1, w2, N, if_positive=False):
    if if_positive:
        recovered = w1 ** N
    else:
        recovered = w1 ** N - w2 ** N
    return x @ recovered.T


if __name__ == "__main__":
    key = jax.random.PRNGKey(0)
    B, p, N = 8, 32, 3
    alpha = 0.5  # init_weights(alpha) -> ones * alpha

    kx, kperturb1, kperturb2 = jax.random.split(key, 3)
    x = jax.random.normal(kx, (B, p), dtype=jnp.float32)
    # Deterministic init (mirrors init_weights) + small perturbation so the
    # two weight vectors differ and the power is exercised.
    w1 = jnp.ones((1, p), jnp.float32) * alpha \
        + 0.1 * jax.random.normal(kperturb1, (1, p), dtype=jnp.float32)
    w2 = jnp.ones((1, p), jnp.float32) * alpha \
        + 0.1 * jax.random.normal(kperturb2, (1, p), dtype=jnp.float32)

    # if_positive = False branch (uses both w1 and w2)
    y = jax.block_until_ready(
        implicit_n_forward(x, w1, w2, N=N, if_positive=False))
    y_ref = reference_forward(x, w1, w2, N, if_positive=False)
    assert y.shape == (B, 1)
    assert jnp.allclose(y, y_ref, atol=1e-5, rtol=1e-5), (y, y_ref)

    # if_positive = True branch (w2 not passed, not DMA'd)
    yp = jax.block_until_ready(
        implicit_n_forward(x, w1, N=N, if_positive=True))
    yp_ref = reference_forward(x, w1, w2, N, if_positive=True)
    assert jnp.allclose(yp, yp_ref, atol=1e-5, rtol=1e-5), (yp, yp_ref)

    # Non-multiple-of-tile batch (exercise padding path)
    B2 = 13
    x2 = jax.random.normal(jax.random.PRNGKey(1), (B2, p), dtype=jnp.float32)
    y2 = jax.block_until_ready(
        implicit_n_forward(x2, w1, w2, N=N, if_positive=False))
    y2_ref = reference_forward(x2, w1, w2, N, if_positive=False)
    assert y2.shape == (B2, 1)
    assert jnp.allclose(y2, y2_ref, atol=1e-5, rtol=1e-5), (y2, y2_ref)

    print("KERNEL_OK")
</pallas_src>

<mosaic_0001>
module attributes {stable_mosaic.version = 11 : i64} {
  func.func @kernel(%arg0: i32, %arg1: memref<8x32xf32, #tpu.memory_space<vmem>>, %arg2: memref<1x32xf32, #tpu.memory_space<vmem>>, %arg3: memref<1x32xf32, #tpu.memory_space<vmem>>, %arg4: memref<8x1xf32, #tpu.memory_space<vmem>>) attributes {dimension_semantics = [#tpu.dimension_semantics<parallel>], iteration_bounds = array<i64: 1>, scalar_prefetch = 0 : i64, scratch_operands = 0 : i64, tpu.core_type = #tpu.core_type<tc>, window_params = [{transform_indices = @transform_0, window_bounds = array<i64: 8, 32>}, {pipeline_mode = #tpu.pipeline_mode<synchronous>, transform_indices = @transform_1, window_bounds = array<i64: 1, 32>}, {pipeline_mode = #tpu.pipeline_mode<synchronous>, transform_indices = @transform_2, window_bounds = array<i64: 1, 32>}, {transform_indices = @transform_3, window_bounds = array<i64: 8, 1>}]} {
    %c0 = arith.constant 0 : index
    %c0_0 = arith.constant 0 : index
    %0 = vector.load %arg2[%c0, %c0_0] : memref<1x32xf32, #tpu.memory_space<vmem>>, vector<1x32xf32>
    %1 = arith.mulf %0, %0 : vector<1x32xf32>
    %2 = arith.mulf %0, %1 : vector<1x32xf32>
    %c0_1 = arith.constant 0 : index
    %c0_2 = arith.constant 0 : index
    %3 = vector.load %arg3[%c0_1, %c0_2] : memref<1x32xf32, #tpu.memory_space<vmem>>, vector<1x32xf32>
    %4 = arith.mulf %3, %3 : vector<1x32xf32>
    %5 = arith.mulf %3, %4 : vector<1x32xf32>
    %6 = arith.subf %2, %5 : vector<1x32xf32>
    %c0_3 = arith.constant 0 : index
    %c0_4 = arith.constant 0 : index
    %7 = vector.load %arg1[%c0_3, %c0_4] : memref<8x32xf32, #tpu.memory_space<vmem>>, vector<8x32xf32>
    %8 = vector.broadcast %6 : vector<1x32xf32> to vector<8x32xf32>
    %9 = arith.mulf %7, %8 : vector<8x32xf32>
    %cst = arith.constant dense<0.000000e+00> : vector<8xf32>
    %10 = vector.multi_reduction <add>, %9, %cst [1] : vector<8x32xf32> to vector<8xf32>
    %11 = vector.shape_cast %10 : vector<8xf32> to vector<8x1xf32>
    %c0_5 = arith.constant 0 : index
    %c0_6 = arith.constant 0 : index
    %12 = vector.load %arg4[%c0_5, %c0_6] : memref<8x1xf32, #tpu.memory_space<vmem>>, vector<8x1xf32>
    tpu.vector_store %arg4[%c0_5, %c0_6], %11 {strides = array<i32>} : memref<8x1xf32, #tpu.memory_space<vmem>>, vector<8x1xf32>,
    return
  }
  func.func @transform_0(%arg0: i32) -> (i32, i32) {
    %c0_i32 = arith.constant 0 : i32
    %c0_i32_0 = arith.constant 0 : i32
    return %arg0, %c0_i32 : i32, i32
  }
  func.func @transform_1(%arg0: i32) -> (i32, i32) {
    %c0_i32 = arith.constant 0 : i32
    %c0_i32_0 = arith.constant 0 : i32
    %c0_i32_1 = arith.constant 0 : i32
    return %c0_i32, %c0_i32_0 : i32, i32
  }
  func.func @transform_2(%arg0: i32) -> (i32, i32) {
    %c0_i32 = arith.constant 0 : i32
    %c0_i32_0 = arith.constant 0 : i32
    %c0_i32_1 = arith.constant 0 : i32
    return %c0_i32, %c0_i32_0 : i32, i32
  }
  func.func @transform_3(%arg0: i32) -> (i32, i32) {
    %c0_i32 = arith.constant 0 : i32
    %c0_i32_0 = arith.constant 0 : i32
    return %arg0, %c0_i32 : i32, i32
  }
}

</mosaic_0001>

<llo_original>
// kernel: tpu_custom_call.1
$region0: #{tpu_custom_call.1}
  #allocation0 [shape = 'u32[]', space=smem, size = 0x4, offset = 0x4, fixed_abs, tag = 'smem constant byte address 0x4 - core index']
  #allocation1 [shape = 'u32[144,128]{1,0:T(1,128)}', space=vmem, size = 0x12000, scoped, tag = 'internal scratch']
  %s0 = inlined_call_operand.hbm [shape: f32[8,32], index: 0, kind: input, shape index: {}]
  %s1 = inlined_call_operand.vmem [shape: f32[1,32], index: 1, kind: input, shape index: {}]
  %s2 = inlined_call_operand.vmem [shape: f32[1,32], index: 2, kind: input, shape index: {}]
  %s3 = inlined_call_operand.vmem [shape: f32[8,1], index: 3, kind: output, shape index: {}]
  %s4 = sld [smem:[#allocation0]]
  $region26: #{tpu_custom_call.1} parent=0
    _
  %s6 = ssub.s32 1, %s4
  %s7 = scalar_select 0, %s6, %s4
  $region1: #{tpu_custom_call.1} parent=0
    #allocation2 [shape = 'u8[4096]{0}', space=vmem, size = 0x1000, scoped, tag = 'input window, operand 0, single buffered']
    #allocation3 [shape = 's32[1]{0}', space=sflag, size = 0x4, scoped, tag = 'scoped memory for tpu_custom_call.1']
    %8 = vsyncpa [#allocation3], 0
    // Predicated region
    $region2: #{tpu_custom_call.1} parent=1 // pred_check
      _
    $region3: #{tpu_custom_call.1} parent=1 // pred_check_branch
      %10 = sbr.rel (0) target = $region5
    $region4: #{tpu_custom_call.1} parent=1 // pred_region
      %s12 = ssub.s32 128, 128
      %13 = vsyncadd [#allocation3], %s12
      %s15 = sshll.u32 [#allocation2], 4
      %s16 = int_to_ptr.vmem [resolvable:$true] %s15
      %18 = dma.hbm_to_vmem [thread:$0]  %s0, 128, %s16, [#allocation3]
    $region5: #{tpu_custom_call.1} parent=1 // pred_fallthru
      _
    // Predicated region
    $region6: #{tpu_custom_call.1} parent=1 // pred_check
      _
    $region7: #{tpu_custom_call.1} parent=1 // pred_check_branch
      %20 = sbr.rel (0) target = $region9
    $region8: #{tpu_custom_call.1} parent=1 // pred_region
      _
    $region9: #{tpu_custom_call.1} parent=1 // pred_fallthru
      _
    // Predicated region
    $region10: #{tpu_custom_call.1} parent=1 // pred_check
      _
    $region11: #{tpu_custom_call.1} parent=1 // pred_check_branch
      %22 = sbr.rel (0) target = $region13
    $region12: #{tpu_custom_call.1} parent=1 // pred_region
      _
    $region13: #{tpu_custom_call.1} parent=1 // pred_fallthru
      _
    // Predicated region
    $region14: #{tpu_custom_call.1} parent=1 // pred_check
      _
    $region15: #{tpu_custom_call.1} parent=1 // pred_check_branch
      %24 = sbr.rel (0) target = $region17
    $region16: #{tpu_custom_call.1} parent=1 // pred_region
      %25 = dma.done [#allocation3], 128
    $region17: #{tpu_custom_call.1} parent=1 // pred_fallthru
      _
    %v26 = vld [vmem:[%s1] sm:$0x1]
    %v27 = vmul.f32 %v26, %v26
    %v28 = vmul.f32 %v26, %v27
    %v29 = vld [vmem:[%s2] sm:$0x1]
    %v30 = vmul.f32 %v29, %v29
    %v31 = vmul.f32 %v29, %v30
    %v32 = vsub.f32 %v28, %v31
    %v33 = vld [vmem:[#allocation2] sm:$0xff]
    %v35 = vlaneseq
    %v36 = vshrl.u32 %v35, 7
    %v37 = vsub.s32 0, %v36
    %v38 = vrot.slane %v32, %v37
    %v40 = vmul.f32 %v33, %v38
    %vm41 = vcmask 261120
    %v42 = vsel %vm41, %v40, 0.0
    %43 = vadd.xlane.f32.xlu0 %v42
    %v44 = vpop.xlane.xlu0 %43
    %vm45 = vcmask 7168
    %46 = vst.msk [vmem:[%s3] sm:$0xff] %vm45, %v44
    // Predicated region
    $region18: #{tpu_custom_call.1} parent=1 // pred_check
      _
    $region19: #{tpu_custom_call.1} parent=1 // pred_check_branch
      %48 = sbr.rel (0) target = $region21
    $region20: #{tpu_custom_call.1} parent=1 // pred_region
      _
    $region21: #{tpu_custom_call.1} parent=1 // pred_fallthru
      _
    // Predicated region
    $region22: #{tpu_custom_call.1} parent=1 // pred_check
      _
    $region23: #{tpu_custom_call.1} parent=1 // pred_check_branch
      %50 = sbr.rel (0) target = $region25
    $region24: #{tpu_custom_call.1} parent=1 // pred_region
      _
    $region25: #{tpu_custom_call.1} parent=1 // pred_fallthru
      _
    %51 = vsyncpa [#allocation3], 1

</llo_original>
